<compile_context>
chip_gen: v7x
topology: tpu7x:2x2x1
jax: 0.10.0
libtpu: 0.0.40
codegen_flags: <defaults>
</compile_context>

<pallas_src>
import math
import functools

import jax
import jax.numpy as jnp
from jax.experimental import pallas as pl
from jax.experimental.pallas import tpu as pltpu


# ---------------------------------------------------------------------------
# Single fused kernel: projections + per-step attention + output projection
# ---------------------------------------------------------------------------

def _fused_mhoa_kernel(xa_ref, xo_ref, wq_ref, wk_ref, wv_ref, wo_ref, o_ref,
                       qv_ref, kv_ref, vv_ref, heads_ref, *,
                       n_heads, num_steps, n_agents, n_opps, key_dim, val_dim,
                       norm):
    H, S, A, O = n_heads, num_steps, n_agents, n_opps
    Kd, Vd = key_dim, val_dim
    HK, HV = H * Kd, H * Vd
    GA, GO = (S * A) // H, (S * O) // H

    xa = xa_ref[...]                       # (GA, H*D)  grouped agent rows
    xo = xo_ref[...]                       # (GO, H*D)  grouped opponent rows

    # --- Projection phase: ONE wide MXU dot per projection (not 3*H tiny dots).
    yq = jnp.dot(xo, wq_ref[...], preferred_element_type=jnp.float32)   # (GO, H*HK)
    yk = jnp.dot(xa, wk_ref[...], preferred_element_type=jnp.float32)   # (GA, H*HK)
    yv = jnp.dot(xo, wv_ref[...], preferred_element_type=jnp.float32)   # (GO, H*HV)

    # Column block h of the wide result == rows [h*G, (h+1)*G) of the torch
    # "viewed" (S*n, H*d) matrix.  Scatter with static slices (no reshape).
    for hh in range(H):
        qv_ref[hh * GO:(hh + 1) * GO, :] = yq[:, hh * HK:(hh + 1) * HK]
        kv_ref[hh * GA:(hh + 1) * GA, :] = yk[:, hh * HK:(hh + 1) * HK]
        vv_ref[hh * GO:(hh + 1) * GO, :] = yv[:, hh * HV:(hh + 1) * HV]

    # --- Attention phase: per-step, unrolled (S is small and static).
    for s in range(S):
        q = qv_ref[s * O:(s + 1) * O, :]   # (O, HK)
        k = kv_ref[s * A:(s + 1) * A, :]   # (A, HK)
        v = vv_ref[s * O:(s + 1) * O, :]   # (O, HV)
        # Contract the shared last dim directly (no materialised q.T).
        scores = norm * jax.lax.dot_general(
            k, q, (((1,), (1,)), ((), ())),
            preferred_element_type=jnp.float32)                          # (A, O)
        m = jnp.max(scores, axis=-1, keepdims=True)
        e = jnp.exp(scores - m)
        # approx=False keeps strict 1e-4 parity with the f32 reference.
        p = e * pl.reciprocal(jnp.sum(e, axis=-1, keepdims=True), approx=False)
        heads_ref[s * A:(s + 1) * A, :] = jnp.dot(
            p, v, preferred_element_type=jnp.float32)                    # (A, HV)

    # --- Output projection: single dot, single contiguous (S*A, E) store.
    o_ref[...] = jnp.dot(heads_ref[...], wo_ref[...],
                         preferred_element_type=jnp.float32)


# ---------------------------------------------------------------------------
# Wrapper (weight widening + free contiguous reshapes + one pallas_call)
# ---------------------------------------------------------------------------

def _widen_blockdiag(W):
    # (H, D, F) -> (H*D, H*(H*F)); column block h is block_diag(W[h], ..., W[h]).
    # Wide[j'*D + d, h*(H*F) + j*F + c] = delta(j', j) * W[h, d, c]
    H, D, F = W.shape
    eye = jnp.eye(H, dtype=W.dtype)
    T = jnp.einsum('ab,hdc->adhbc', eye, W)        # (j', d, h, j, c)
    return T.reshape(H * D, H * H * F)


def multi_head_opp_attention(h, hOpp, Wq, Wk, Wv, Wo):
    S, A, D = h.shape
    S2, O, Do = hOpp.shape
    H, Dq, Kd = Wq.shape
    Vd = Wv.shape[-1]
    E = Wo.shape[-1]
    assert S2 == S and Do == D == Dq
    # torch's heads.view(-1, H*Vd) @ W_out.view(-1, E) silently requires Vd == Kd.
    assert Vd == Kd
    # TODO(synk): if n_heads does not divide numSteps*numAgents / numSteps*numOpps,
    # fall back to a two-launch head-major variant (projection kernel -> free
    # contiguous XLA reshape -> attention kernel); the fused path needs divisibility.
    assert (S * A) % H == 0 and (S * O) % H == 0
    GA, GO = (S * A) // H, (S * O) // H
    norm = 1.0 / math.sqrt(Kd)

    # Free contiguous reshapes: group H consecutive flattened rows per VMEM row.
    xa_grp = h.reshape(GA, H * D)          # (GA, H*D)
    xo_grp = hOpp.reshape(GO, H * D)       # (GO, H*D)

    # Tiny constant-shape weight prep (block-diagonal widening + torch W_out.view).
    Wq_w = _widen_blockdiag(Wq)            # (H*D, H*H*Kd)
    Wk_w = _widen_blockdiag(Wk)            # (H*D, H*H*Kd)
    Wv_w = _widen_blockdiag(Wv)            # (H*D, H*H*Vd)
    Wo_flat = Wo.reshape(H * Kd, E)        # (H*Kd, E)

    vmem = pltpu.MemorySpace.VMEM
    out2d = pl.pallas_call(
        functools.partial(_fused_mhoa_kernel, n_heads=H, num_steps=S, n_agents=A,
                          n_opps=O, key_dim=Kd, val_dim=Vd, norm=norm),
        out_shape=jax.ShapeDtypeStruct((S * A, E), jnp.float32),
        in_specs=[pl.BlockSpec(memory_space=vmem)] * 6,
        out_specs=pl.BlockSpec(memory_space=vmem),
        scratch_shapes=[
            pltpu.VMEM((S * O, H * Kd), jnp.float32),   # Q in "viewed" layout
            pltpu.VMEM((S * A, H * Kd), jnp.float32),   # K in "viewed" layout
            pltpu.VMEM((S * O, H * Vd), jnp.float32),   # V in "viewed" layout
            pltpu.VMEM((S * A, H * Vd), jnp.float32),   # heads accumulation slab
        ],
    )(xa_grp, xo_grp, Wq_w, Wk_w, Wv_w, Wo_flat)

    return out2d.reshape(S, A, E)


# ---------------------------------------------------------------------------
# Pure-JAX reference (mirrors the torch code line by line) for verification
# ---------------------------------------------------------------------------

def reference(h, hOpp, Wq, Wk, Wv, Wo):
    S, A, D = h.shape
    _, O, Do = hOpp.shape
    H, _, Kd = Wq.shape
    Vd = Wv.shape[-1]
    E = Wo.shape[-1]
    norm = 1.0 / math.sqrt(Kd)
    hflat = h.reshape(-1, D)
    hOppFlat = hOpp.reshape(-1, Do)
    Q = jnp.matmul(hOppFlat, Wq).reshape(S, O, -1)
    V = jnp.matmul(hOppFlat, Wv).reshape(S, O, -1)
    K = jnp.matmul(hflat, Wk).reshape(S, A, -1)
    compat = norm * jnp.matmul(K, jnp.swapaxes(Q, 1, 2))
    attn = jax.nn.softmax(compat, axis=-1)
    heads = jnp.matmul(attn, V)
    out = jnp.matmul(heads.reshape(-1, H * Vd), Wo.reshape(-1, E)).reshape(S, A, E)
    return out


# ---------------------------------------------------------------------------
# Main
# ---------------------------------------------------------------------------

if __name__ == "__main__":
    # module config (embed_dim given -> val_dim = key_dim = embed_dim // n_heads)
    n_heads = 4
    input_dim = 32
    opp_input_dim = 32   # must equal input_dim (torch forward broadcasts W_query over it)
    embed_dim = 32
    val_dim = embed_dim // n_heads
    key_dim = val_dim

    numSteps, numAgents, numOpps = 2, 8, 6

    key = jax.random.PRNGKey(0)
    k_wq, k_wk, k_wv, k_wo, k_h, k_ho = jax.random.split(key, 6)

    def uniform_param(k, shape):
        stdv = 1.0 / math.sqrt(shape[-1])
        return jax.random.uniform(k, shape, jnp.float32, minval=-stdv, maxval=stdv)

    W_query = uniform_param(k_wq, (n_heads, input_dim, key_dim))
    W_key = uniform_param(k_wk, (n_heads, input_dim, key_dim))
    W_val = uniform_param(k_wv, (n_heads, input_dim, val_dim))
    W_out = uniform_param(k_wo, (n_heads, key_dim, embed_dim))

    h = jax.random.normal(k_h, (numSteps, numAgents, input_dim), jnp.float32)
    hOpp = jax.random.normal(k_ho, (numSteps, numOpps, opp_input_dim), jnp.float32)

    fwd = jax.jit(multi_head_opp_attention)
    out = jax.block_until_ready(fwd(h, hOpp, W_query, W_key, W_val, W_out))

    ref = jax.block_until_ready(reference(h, hOpp, W_query, W_key, W_val, W_out))
    assert out.shape == (numSteps, numAgents, embed_dim)
    assert jnp.allclose(out, ref, atol=1e-4, rtol=1e-4), "mismatch vs reference"

    print("KERNEL_OK")
</pallas_src>

<mosaic_0001>
module attributes {stable_mosaic.version = 11 : i64} {
  func.func @_fused_mhoa_kernel(%arg0: memref<4x128xf32, #tpu.memory_space<vmem>>, %arg1: memref<3x128xf32, #tpu.memory_space<vmem>>, %arg2: memref<128x128xf32, #tpu.memory_space<vmem>>, %arg3: memref<128x128xf32, #tpu.memory_space<vmem>>, %arg4: memref<128x128xf32, #tpu.memory_space<vmem>>, %arg5: memref<32x32xf32, #tpu.memory_space<vmem>>, %arg6: memref<16x32xf32, #tpu.memory_space<vmem>>, %arg7: memref<12x32xf32, #tpu.memory_space<vmem>>, %arg8: memref<16x32xf32, #tpu.memory_space<vmem>>, %arg9: memref<12x32xf32, #tpu.memory_space<vmem>>, %arg10: memref<16x32xf32, #tpu.memory_space<vmem>>) attributes {dimension_semantics = [], scalar_prefetch = 0 : i64, scratch_operands = 4 : i64, tpu.core_type = #tpu.core_type<tc>} {
    %c0 = arith.constant 0 : index
    %c0_0 = arith.constant 0 : index
    %0 = vector.load %arg0[%c0, %c0_0] : memref<4x128xf32, #tpu.memory_space<vmem>>, vector<4x128xf32>
    %c0_1 = arith.constant 0 : index
    %c0_2 = arith.constant 0 : index
    %1 = vector.load %arg1[%c0_1, %c0_2] : memref<3x128xf32, #tpu.memory_space<vmem>>, vector<3x128xf32>
    %c0_3 = arith.constant 0 : index
    %c0_4 = arith.constant 0 : index
    %2 = vector.load %arg2[%c0_3, %c0_4] : memref<128x128xf32, #tpu.memory_space<vmem>>, vector<128x128xf32>
    %cst = arith.constant dense<0.000000e+00> : vector<3x128xf32>
    %3 = tpu.matmul %1, %2, %cst {dimension_numbers = #tpu.dot_dimension_numbers<[1], [0], [0], [1], [0, 0, 1, 1], [], []>} : vector<3x128xf32>, vector<128x128xf32>, vector<3x128xf32> -> vector<3x128xf32>
    %c0_5 = arith.constant 0 : index
    %c0_6 = arith.constant 0 : index
    %4 = vector.load %arg3[%c0_5, %c0_6] : memref<128x128xf32, #tpu.memory_space<vmem>>, vector<128x128xf32>
    %cst_7 = arith.constant dense<0.000000e+00> : vector<4x128xf32>
    %5 = tpu.matmul %0, %4, %cst_7 {dimension_numbers = #tpu.dot_dimension_numbers<[1], [0], [0], [1], [0, 0, 1, 1], [], []>} : vector<4x128xf32>, vector<128x128xf32>, vector<4x128xf32> -> vector<4x128xf32>
    %c0_8 = arith.constant 0 : index
    %c0_9 = arith.constant 0 : index
    %6 = vector.load %arg4[%c0_8, %c0_9] : memref<128x128xf32, #tpu.memory_space<vmem>>, vector<128x128xf32>
    %cst_10 = arith.constant dense<0.000000e+00> : vector<3x128xf32>
    %7 = tpu.matmul %1, %6, %cst_10 {dimension_numbers = #tpu.dot_dimension_numbers<[1], [0], [0], [1], [0, 0, 1, 1], [], []>} : vector<3x128xf32>, vector<128x128xf32>, vector<3x128xf32> -> vector<3x128xf32>
    %8 = vector.extract_strided_slice %3 {offsets = [0, 0], sizes = [3, 32], strides = [1, 1]} : vector<3x128xf32> to vector<3x32xf32>
    %c0_11 = arith.constant 0 : index
    %c0_12 = arith.constant 0 : index
    %9 = vector.load %arg7[%c0_11, %c0_12] : memref<12x32xf32, #tpu.memory_space<vmem>>, vector<3x32xf32>
    tpu.vector_store %arg7[%c0_11, %c0_12], %8 {strides = array<i32>} : memref<12x32xf32, #tpu.memory_space<vmem>>, vector<3x32xf32>,
    %10 = vector.extract_strided_slice %5 {offsets = [0, 0], sizes = [4, 32], strides = [1, 1]} : vector<4x128xf32> to vector<4x32xf32>
    %c0_13 = arith.constant 0 : index
    %c0_14 = arith.constant 0 : index
    %11 = vector.load %arg8[%c0_13, %c0_14] : memref<16x32xf32, #tpu.memory_space<vmem>>, vector<4x32xf32>
    tpu.vector_store %arg8[%c0_13, %c0_14], %10 {strides = array<i32>} : memref<16x32xf32, #tpu.memory_space<vmem>>, vector<4x32xf32>,
    %12 = vector.extract_strided_slice %7 {offsets = [0, 0], sizes = [3, 32], strides = [1, 1]} : vector<3x128xf32> to vector<3x32xf32>
    %c0_15 = arith.constant 0 : index
    %c0_16 = arith.constant 0 : index
    %13 = vector.load %arg9[%c0_15, %c0_16] : memref<12x32xf32, #tpu.memory_space<vmem>>, vector<3x32xf32>
    tpu.vector_store %arg9[%c0_15, %c0_16], %12 {strides = array<i32>} : memref<12x32xf32, #tpu.memory_space<vmem>>, vector<3x32xf32>,
    %14 = vector.extract_strided_slice %3 {offsets = [0, 32], sizes = [3, 32], strides = [1, 1]} : vector<3x128xf32> to vector<3x32xf32>
    %c3 = arith.constant 3 : index
    %c0_17 = arith.constant 0 : index
    %15 = vector.load %arg7[%c3, %c0_17] : memref<12x32xf32, #tpu.memory_space<vmem>>, vector<3x32xf32>
    tpu.vector_store %arg7[%c3, %c0_17], %14 {strides = array<i32>} : memref<12x32xf32, #tpu.memory_space<vmem>>, vector<3x32xf32>,
    %16 = vector.extract_strided_slice %5 {offsets = [0, 32], sizes = [4, 32], strides = [1, 1]} : vector<4x128xf32> to vector<4x32xf32>
    %c4 = arith.constant 4 : index
    %c0_18 = arith.constant 0 : index
    %17 = vector.load %arg8[%c4, %c0_18] : memref<16x32xf32, #tpu.memory_space<vmem>>, vector<4x32xf32>
    tpu.vector_store %arg8[%c4, %c0_18], %16 {strides = array<i32>} : memref<16x32xf32, #tpu.memory_space<vmem>>, vector<4x32xf32>,
    %18 = vector.extract_strided_slice %7 {offsets = [0, 32], sizes = [3, 32], strides = [1, 1]} : vector<3x128xf32> to vector<3x32xf32>
    %c3_19 = arith.constant 3 : index
    %c0_20 = arith.constant 0 : index
    %19 = vector.load %arg9[%c3_19, %c0_20] : memref<12x32xf32, #tpu.memory_space<vmem>>, vector<3x32xf32>
    tpu.vector_store %arg9[%c3_19, %c0_20], %18 {strides = array<i32>} : memref<12x32xf32, #tpu.memory_space<vmem>>, vector<3x32xf32>,
    %20 = vector.extract_strided_slice %3 {offsets = [0, 64], sizes = [3, 32], strides = [1, 1]} : vector<3x128xf32> to vector<3x32xf32>
    %c6 = arith.constant 6 : index
    %c0_21 = arith.constant 0 : index
    %21 = vector.load %arg7[%c6, %c0_21] : memref<12x32xf32, #tpu.memory_space<vmem>>, vector<3x32xf32>
    tpu.vector_store %arg7[%c6, %c0_21], %20 {strides = array<i32>} : memref<12x32xf32, #tpu.memory_space<vmem>>, vector<3x32xf32>,
    %22 = vector.extract_strided_slice %5 {offsets = [0, 64], sizes = [4, 32], strides = [1, 1]} : vector<4x128xf32> to vector<4x32xf32>
    %c8 = arith.constant 8 : index
    %c0_22 = arith.constant 0 : index
    %23 = vector.load %arg8[%c8, %c0_22] : memref<16x32xf32, #tpu.memory_space<vmem>>, vector<4x32xf32>
    tpu.vector_store %arg8[%c8, %c0_22], %22 {strides = array<i32>} : memref<16x32xf32, #tpu.memory_space<vmem>>, vector<4x32xf32>,
    %24 = vector.extract_strided_slice %7 {offsets = [0, 64], sizes = [3, 32], strides = [1, 1]} : vector<3x128xf32> to vector<3x32xf32>
    %c6_23 = arith.constant 6 : index
    %c0_24 = arith.constant 0 : index
    %25 = vector.load %arg9[%c6_23, %c0_24] : memref<12x32xf32, #tpu.memory_space<vmem>>, vector<3x32xf32>
    tpu.vector_store %arg9[%c6_23, %c0_24], %24 {strides = array<i32>} : memref<12x32xf32, #tpu.memory_space<vmem>>, vector<3x32xf32>,
    %26 = vector.extract_strided_slice %3 {offsets = [0, 96], sizes = [3, 32], strides = [1, 1]} : vector<3x128xf32> to vector<3x32xf32>
    %c9 = arith.constant 9 : index
    %c0_25 = arith.constant 0 : index
    %27 = vector.load %arg7[%c9, %c0_25] : memref<12x32xf32, #tpu.memory_space<vmem>>, vector<3x32xf32>
    tpu.vector_store %arg7[%c9, %c0_25], %26 {strides = array<i32>} : memref<12x32xf32, #tpu.memory_space<vmem>>, vector<3x32xf32>,
    %28 = vector.extract_strided_slice %5 {offsets = [0, 96], sizes = [4, 32], strides = [1, 1]} : vector<4x128xf32> to vector<4x32xf32>
    %c12 = arith.constant 12 : index
    %c0_26 = arith.constant 0 : index
    %29 = vector.load %arg8[%c12, %c0_26] : memref<16x32xf32, #tpu.memory_space<vmem>>, vector<4x32xf32>
    tpu.vector_store %arg8[%c12, %c0_26], %28 {strides = array<i32>} : memref<16x32xf32, #tpu.memory_space<vmem>>, vector<4x32xf32>,
    %30 = vector.extract_strided_slice %7 {offsets = [0, 96], sizes = [3, 32], strides = [1, 1]} : vector<3x128xf32> to vector<3x32xf32>
    %c9_27 = arith.constant 9 : index
    %c0_28 = arith.constant 0 : index
    %31 = vector.load %arg9[%c9_27, %c0_28] : memref<12x32xf32, #tpu.memory_space<vmem>>, vector<3x32xf32>
    tpu.vector_store %arg9[%c9_27, %c0_28], %30 {strides = array<i32>} : memref<12x32xf32, #tpu.memory_space<vmem>>, vector<3x32xf32>,
    %c0_29 = arith.constant 0 : index
    %c0_30 = arith.constant 0 : index
    %32 = vector.load %arg7[%c0_29, %c0_30] : memref<12x32xf32, #tpu.memory_space<vmem>>, vector<6x32xf32>
    %c0_31 = arith.constant 0 : index
    %c0_32 = arith.constant 0 : index
    %33 = vector.load %arg8[%c0_31, %c0_32] : memref<16x32xf32, #tpu.memory_space<vmem>>, vector<8x32xf32>
    %c0_33 = arith.constant 0 : index
    %c0_34 = arith.constant 0 : index
    %34 = vector.load %arg9[%c0_33, %c0_34] : memref<12x32xf32, #tpu.memory_space<vmem>>, vector<6x32xf32>
    %cst_35 = arith.constant dense<0.000000e+00> : vector<8x6xf32>
    %35 = tpu.matmul %33, %32, %cst_35 {dimension_numbers = #tpu.dot_dimension_numbers<[1], [1], [0], [0], [0, 0, 1, 0], [], []>} : vector<8x32xf32>, vector<6x32xf32>, vector<8x6xf32> -> vector<8x6xf32>
    %cst_36 = arith.constant 0.353553385 : f32
    %36 = vector.broadcast %cst_36 : f32 to vector<8x6xf32>
    %37 = arith.mulf %36, %35 : vector<8x6xf32>
    %cst_37 = arith.constant dense<0xFF800000> : vector<8xf32>
    %38 = vector.multi_reduction <maximumf>, %37, %cst_37 [1] : vector<8x6xf32> to vector<8xf32>
    %39 = vector.shape_cast %38 : vector<8xf32> to vector<8x1xf32>
    %40 = vector.broadcast %39 : vector<8x1xf32> to vector<8x6xf32>
    %41 = arith.subf %37, %40 : vector<8x6xf32>
    %42 = math.exp %41 : vector<8x6xf32>
    %cst_38 = arith.constant dense<0.000000e+00> : vector<8xf32>
    %43 = vector.multi_reduction <add>, %42, %cst_38 [1] : vector<8x6xf32> to vector<8xf32>
    %44 = vector.shape_cast %43 : vector<8xf32> to vector<8x1xf32>
    %45 = tpu.reciprocal %44 : vector<8x1xf32> -> vector<8x1xf32>
    %46 = vector.broadcast %45 : vector<8x1xf32> to vector<8x6xf32>
    %47 = arith.mulf %42, %46 : vector<8x6xf32>
    %cst_39 = arith.constant dense<0.000000e+00> : vector<8x32xf32>
    %48 = tpu.matmul %47, %34, %cst_39 {dimension_numbers = #tpu.dot_dimension_numbers<[1], [0], [0], [1], [0, 0, 1, 1], [], []>} : vector<8x6xf32>, vector<6x32xf32>, vector<8x32xf32> -> vector<8x32xf32>
    %c0_40 = arith.constant 0 : index
    %c0_41 = arith.constant 0 : index
    %49 = vector.load %arg10[%c0_40, %c0_41] : memref<16x32xf32, #tpu.memory_space<vmem>>, vector<8x32xf32>
    tpu.vector_store %arg10[%c0_40, %c0_41], %48 {strides = array<i32>} : memref<16x32xf32, #tpu.memory_space<vmem>>, vector<8x32xf32>,
    %c6_42 = arith.constant 6 : index
    %c0_43 = arith.constant 0 : index
    %50 = vector.load %arg7[%c6_42, %c0_43] : memref<12x32xf32, #tpu.memory_space<vmem>>, vector<6x32xf32>
    %c8_44 = arith.constant 8 : index
    %c0_45 = arith.constant 0 : index
    %51 = vector.load %arg8[%c8_44, %c0_45] : memref<16x32xf32, #tpu.memory_space<vmem>>, vector<8x32xf32>
    %c6_46 = arith.constant 6 : index
    %c0_47 = arith.constant 0 : index
    %52 = vector.load %arg9[%c6_46, %c0_47] : memref<12x32xf32, #tpu.memory_space<vmem>>, vector<6x32xf32>
    %cst_48 = arith.constant dense<0.000000e+00> : vector<8x6xf32>
    %53 = tpu.matmul %51, %50, %cst_48 {dimension_numbers = #tpu.dot_dimension_numbers<[1], [1], [0], [0], [0, 0, 1, 0], [], []>} : vector<8x32xf32>, vector<6x32xf32>, vector<8x6xf32> -> vector<8x6xf32>
    %cst_49 = arith.constant 0.353553385 : f32
    %54 = vector.broadcast %cst_49 : f32 to vector<8x6xf32>
    %55 = arith.mulf %54, %53 : vector<8x6xf32>
    %cst_50 = arith.constant dense<0xFF800000> : vector<8xf32>
    %56 = vector.multi_reduction <maximumf>, %55, %cst_50 [1] : vector<8x6xf32> to vector<8xf32>
    %57 = vector.shape_cast %56 : vector<8xf32> to vector<8x1xf32>
    %58 = vector.broadcast %57 : vector<8x1xf32> to vector<8x6xf32>
    %59 = arith.subf %55, %58 : vector<8x6xf32>
    %60 = math.exp %59 : vector<8x6xf32>
    %cst_51 = arith.constant dense<0.000000e+00> : vector<8xf32>
    %61 = vector.multi_reduction <add>, %60, %cst_51 [1] : vector<8x6xf32> to vector<8xf32>
    %62 = vector.shape_cast %61 : vector<8xf32> to vector<8x1xf32>
    %63 = tpu.reciprocal %62 : vector<8x1xf32> -> vector<8x1xf32>
    %64 = vector.broadcast %63 : vector<8x1xf32> to vector<8x6xf32>
    %65 = arith.mulf %60, %64 : vector<8x6xf32>
    %cst_52 = arith.constant dense<0.000000e+00> : vector<8x32xf32>
    %66 = tpu.matmul %65, %52, %cst_52 {dimension_numbers = #tpu.dot_dimension_numbers<[1], [0], [0], [1], [0, 0, 1, 1], [], []>} : vector<8x6xf32>, vector<6x32xf32>, vector<8x32xf32> -> vector<8x32xf32>
    %c8_53 = arith.constant 8 : index
    %c0_54 = arith.constant 0 : index
    %67 = vector.load %arg10[%c8_53, %c0_54] : memref<16x32xf32, #tpu.memory_space<vmem>>, vector<8x32xf32>
    tpu.vector_store %arg10[%c8_53, %c0_54], %66 {strides = array<i32>} : memref<16x32xf32, #tpu.memory_space<vmem>>, vector<8x32xf32>,
    %c0_55 = arith.constant 0 : index
    %c0_56 = arith.constant 0 : index
    %68 = vector.load %arg10[%c0_55, %c0_56] : memref<16x32xf32, #tpu.memory_space<vmem>>, vector<16x32xf32>
    %c0_57 = arith.constant 0 : index
    %c0_58 = arith.constant 0 : index
    %69 = vector.load %arg5[%c0_57, %c0_58] : memref<32x32xf32, #tpu.memory_space<vmem>>, vector<32x32xf32>
    %cst_59 = arith.constant dense<0.000000e+00> : vector<16x32xf32>
    %70 = tpu.matmul %68, %69, %cst_59 {dimension_numbers = #tpu.dot_dimension_numbers<[1], [0], [0], [1], [0, 0, 1, 1], [], []>} : vector<16x32xf32>, vector<32x32xf32>, vector<16x32xf32> -> vector<16x32xf32>
    %c0_60 = arith.constant 0 : index
    %c0_61 = arith.constant 0 : index
    %71 = vector.load %arg6[%c0_60, %c0_61] : memref<16x32xf32, #tpu.memory_space<vmem>>, vector<16x32xf32>
    tpu.vector_store %arg6[%c0_60, %c0_61], %70 {strides = array<i32>} : memref<16x32xf32, #tpu.memory_space<vmem>>, vector<16x32xf32>,
    return
  }
}

</mosaic_0001>

<llo_original>
// kernel: multi_head_opp_attention.1
$region0: #{multi_head_opp_attention.1}
  #allocation0 [shape = 'u32[]', space=smem, size = 0x4, offset = 0x4, fixed_abs, tag = 'smem constant byte address 0x4 - core index']
  #allocation1 [shape = 'u32[144,128]{1,0:T(1,128)}', space=vmem, size = 0x12000, scoped, tag = 'internal scratch']
  #allocation2 [shape = 'f32[12,32]{1,0:T(8,128)}', space=vmem, size = 0x2000, scoped, tag = 'scratch operand']
  #allocation3 [shape = 'f32[16,32]{1,0:T(8,128)}', space=vmem, size = 0x2000, scoped, tag = 'scratch operand']
  #allocation4 [shape = 'f32[12,32]{1,0:T(8,128)}', space=vmem, size = 0x2000, scoped, tag = 'scratch operand']
  #allocation5 [shape = 'f32[16,32]{1,0:T(8,128)}', space=vmem, size = 0x2000, scoped, tag = 'scratch operand']
  %s0 = inlined_call_operand.vmem [shape: f32[4,128], index: 0, kind: input, shape index: {}]
  %s1 = inlined_call_operand.vmem [shape: f32[3,128], index: 1, kind: input, shape index: {}]
  %s2 = inlined_call_operand.vmem [shape: f32[128,128], index: 2, kind: input, shape index: {}]
  %s3 = inlined_call_operand.vmem [shape: f32[128,128], index: 3, kind: input, shape index: {}]
  %s4 = inlined_call_operand.vmem [shape: f32[128,128], index: 4, kind: input, shape index: {}]
  %s5 = inlined_call_operand.vmem [shape: f32[32,32], index: 5, kind: input, shape index: {}]
  %s6 = inlined_call_operand.hbm [shape: f32[16,32], index: 6, kind: output, shape index: {}]
  %s7 = sld [smem:[#allocation0]]
  $region34: #{multi_head_opp_attention.1} parent=0
    _
  %s9 = ssub.s32 1, %s7
  %s10 = scalar_select 0, %s9, %s7
  $region1: #{multi_head_opp_attention.1} parent=0
    #allocation6 [shape = 'u8[8192]{0}', space=vmem, size = 0x2000, scoped, tag = 'output window, operand 0, single buffered']
    #allocation7 [shape = 's32[1]{0}', space=sflag, size = 0x4, scoped, tag = 'scoped memory for multi_head_opp_attention.1']
    %11 = vsyncpa [#allocation7], 0
    // Predicated region
    $region2: #{multi_head_opp_attention.1} parent=1 // pred_check
      _
    $region3: #{multi_head_opp_attention.1} parent=1 // pred_check_branch
      %13 = sbr.rel (0) target = $region5
    $region4: #{multi_head_opp_attention.1} parent=1 // pred_region
      _
    $region5: #{multi_head_opp_attention.1} parent=1 // pred_fallthru
      _
    // Predicated region
    $region6: #{multi_head_opp_attention.1} parent=1 // pred_check
      _
    $region7: #{multi_head_opp_attention.1} parent=1 // pred_check_branch
      %15 = sbr.rel (0) target = $region9
    $region8: #{multi_head_opp_attention.1} parent=1 // pred_region
      _
    $region9: #{multi_head_opp_attention.1} parent=1 // pred_fallthru
      _
    // Predicated region
    $region10: #{multi_head_opp_attention.1} parent=1 // pred_check
      _
    $region11: #{multi_head_opp_attention.1} parent=1 // pred_check_branch
      %17 = sbr.rel (0) target = $region13
    $region12: #{multi_head_opp_attention.1} parent=1 // pred_region
      _
    $region13: #{multi_head_opp_attention.1} parent=1 // pred_fallthru
      _
    // Predicated region
    $region14: #{multi_head_opp_attention.1} parent=1 // pred_check
      _
    $region15: #{multi_head_opp_attention.1} parent=1 // pred_check_branch
      %19 = sbr.rel (0) target = $region17
    $region16: #{multi_head_opp_attention.1} parent=1 // pred_region
      _
    $region17: #{multi_head_opp_attention.1} parent=1 // pred_fallthru
      _
    // Predicated region
    $region18: #{multi_head_opp_attention.1} parent=1 // pred_check
      _
    $region19: #{multi_head_opp_attention.1} parent=1 // pred_check_branch
      %21 = sbr.rel (0) target = $region21
    $region20: #{multi_head_opp_attention.1} parent=1 // pred_region
      _
    $region21: #{multi_head_opp_attention.1} parent=1 // pred_fallthru
      _
    // Predicated region
    $region22: #{multi_head_opp_attention.1} parent=1 // pred_check
      _
    $region23: #{multi_head_opp_attention.1} parent=1 // pred_check_branch
      %23 = sbr.rel (0) target = $region25
    $region24: #{multi_head_opp_attention.1} parent=1 // pred_region
      _
    $region25: #{multi_head_opp_attention.1} parent=1 // pred_fallthru
      _
    %v24 = vld [vmem:[%s0] sm:$0xf]
    %v25 = vld [vmem:[%s1] sm:$0x7]
    %v26 = vld [vmem:[%s2] sm:$0xff]
    %v27 = vld [vmem:[%s2 + $0x8] sm:$0xff]
    %v28 = vld [vmem:[%s2 + $0x10] sm:$0xff]
    %v29 = vld [vmem:[%s2 + $0x18] sm:$0xff]
    %v30 = vld [vmem:[%s2 + $0x20] sm:$0xff]
    %v31 = vld [vmem:[%s2 + $0x28] sm:$0xff]
    %v32 = vld [vmem:[%s2 + $0x30] sm:$0xff]
    %v33 = vld [vmem:[%s2 + $0x38] sm:$0xff]
    %v34 = vld [vmem:[%s2 + $0x40] sm:$0xff]
    %v35 = vld [vmem:[%s2 + $0x48] sm:$0xff]
    %v36 = vld [vmem:[%s2 + $0x50] sm:$0xff]
    %v37 = vld [vmem:[%s2 + $0x58] sm:$0xff]
    %v38 = vld [vmem:[%s2 + $0x60] sm:$0xff]
    %v39 = vld [vmem:[%s2 + $0x68] sm:$0xff]
    %v40 = vld [vmem:[%s2 + $0x70] sm:$0xff]
    %v41 = vld [vmem:[%s2 + $0x78] sm:$0xff]
    %42 = vmatprep.subr.mxu0 0.0
    %43 = vmatpush1.msra.mxu0 %v26
    %44 = vmatprep.subr.mxu0 0.0
    %45 = vmatpush1.msra.mxu0 %v27
    %46 = vmatprep.subr.mxu0 0.0
    %47 = vmatpush1.msra.mxu0 %v28
    %48 = vmatprep.subr.mxu0 0.0
    %49 = vmatpush1.msra.mxu0 %v29
    %50 = vmatprep.subr.mxu0 0.0
    %51 = vmatpush1.msra.mxu0 %v30
    %52 = vmatprep.subr.mxu0 0.0
    %53 = vmatpush1.msra.mxu0 %v31
    %54 = vmatprep.subr.mxu0 0.0
    %55 = vmatpush1.msra.mxu0 %v32
    %56 = vmatprep.subr.mxu0 0.0
    %57 = vmatpush1.msra.mxu0 %v33
    %58 = vmatprep.subr.mxu0 0.0
    %59 = vmatpush1.msra.mxu0 %v34
    %60 = vmatprep.subr.mxu0 0.0
    %61 = vmatpush1.msra.mxu0 %v35
    %62 = vmatprep.subr.mxu0 0.0
    %63 = vmatpush1.msra.mxu0 %v36
    %64 = vmatprep.subr.mxu0 0.0
    %65 = vmatpush1.msra.mxu0 %v37
    %66 = vmatprep.subr.mxu0 0.0
    %67 = vmatpush1.msra.mxu0 %v38
    %68 = vmatprep.subr.mxu0 0.0
    %69 = vmatpush1.msra.mxu0 %v39
    %70 = vmatprep.subr.mxu0 0.0
    %71 = vmatpush1.msra.mxu0 %v40
    %72 = vmatprep.subr.mxu0 0.0
    %73 = vmatpush1.msra.mxu0 %v41
    %74 = vmatprep.subr.mxu0 0.0
    %75 = vmatpush1.msra.mxu0 0.0
    %76 = vmatprep.subr.mxu0 0.0
    %77 = vmatpush1.msra.mxu0 0.0
    %78 = vmatprep.subr.mxu0 0.0
    %79 = vmatpush1.msra.mxu0 0.0
    %80 = vmatprep.subr.mxu0 0.0
    %81 = vmatpush1.msra.mxu0 0.0
    %82 = vmatprep.subr.mxu0 0.0
    %83 = vmatpush1.msra.mxu0 0.0
    %84 = vmatprep.subr.mxu0 0.0
    %85 = vmatpush1.msra.mxu0 0.0
    %86 = vmatprep.subr.mxu0 0.0
    %87 = vmatpush1.msra.mxu0 0.0
    %88 = vmatprep.subr.mxu0 0.0
    %89 = vmatpush1.msra.mxu0 0.0
    %90 = vmatprep.subr.mxu0 0.0
    %91 = vmatpush1.msra.mxu0 0.0
    %92 = vmatprep.subr.mxu0 0.0
    %93 = vmatpush1.msra.mxu0 0.0
    %94 = vmatprep.subr.mxu0 0.0
    %95 = vmatpush1.msra.mxu0 0.0
    %96 = vmatprep.subr.mxu0 0.0
    %97 = vmatpush1.msra.mxu0 0.0
    %98 = vmatprep.subr.mxu0 0.0
    %99 = vmatpush1.msra.mxu0 0.0
    %100 = vmatprep.subr.mxu0 0.0
    %101 = vmatpush1.msra.mxu0 0.0
    %102 = vmatprep.subr.mxu0 0.0
    %103 = vmatpush1.msra.mxu0 0.0
    %104 = vmatprep.subr.mxu0 0.0
    %105 = vmatpush1.msra.mxu0 0.0
    %106 = vmatprep.mubr.f32.mxu0 0.0
    %107 = vmatmul.mubr.f32.gmra.mrb[0].mxu0 %v25
    %v108 = vpop.f32.mrb[0].mxu0
    %v109 = vadd.f32 0.0, %v108
    %v110 = vpop.f32.mrb[0].mxu0
    %111 = vdwg.mxu0
    %v112 = vld [vmem:[%s3] sm:$0xff]
    %v113 = vld [vmem:[%s3 + $0x8] sm:$0xff]
    %v114 = vld [vmem:[%s3 + $0x10] sm:$0xff]
    %v115 = vld [vmem:[%s3 + $0x18] sm:$0xff]
    %v116 = vld [vmem:[%s3 + $0x20] sm:$0xff]
    %v117 = vld [vmem:[%s3 + $0x28] sm:$0xff]
    %v118 = vld [vmem:[%s3 + $0x30] sm:$0xff]
    %v119 = vld [vmem:[%s3 + $0x38] sm:$0xff]
    %v120 = vld [vmem:[%s3 + $0x40] sm:$0xff]
    %v121 = vld [vmem:[%s3 + $0x48] sm:$0xff]
    %v122 = vld [vmem:[%s3 + $0x50] sm:$0xff]
    %v123 = vld [vmem:[%s3 + $0x58] sm:$0xff]
    %v124 = vld [vmem:[%s3 + $0x60] sm:$0xff]
    %v125 = vld [vmem:[%s3 + $0x68] sm:$0xff]
    %v126 = vld [vmem:[%s3 + $0x70] sm:$0xff]
    %v127 = vld [vmem:[%s3 + $0x78] sm:$0xff]
    %128 = vmatprep.subr.mxu0 0.0
    %129 = vmatpush1.msra.mxu0 %v112
    %130 = vmatprep.subr.mxu0 0.0
    %131 = vmatpush1.msra.mxu0 %v113
    %132 = vmatprep.subr.mxu0 0.0
    %133 = vmatpush1.msra.mxu0 %v114
    %134 = vmatprep.subr.mxu0 0.0
    %135 = vmatpush1.msra.mxu0 %v115
    %136 = vmatprep.subr.mxu0 0.0
    %137 = vmatpush1.msra.mxu0 %v116
    %138 = vmatprep.subr.mxu0 0.0
    %139 = vmatpush1.msra.mxu0 %v117
    %140 = vmatprep.subr.mxu0 0.0
    %141 = vmatpush1.msra.mxu0 %v118
    %142 = vmatprep.subr.mxu0 0.0
    %143 = vmatpush1.msra.mxu0 %v119
    %144 = vmatprep.subr.mxu0 0.0
    %145 = vmatpush1.msra.mxu0 %v120
    %146 = vmatprep.subr.mxu0 0.0
    %147 = vmatpush1.msra.mxu0 %v121
    %148 = vmatprep.subr.mxu0 0.0
    %149 = vmatpush1.msra.mxu0 %v122
    %150 = vmatprep.subr.mxu0 0.0
    %151 = vmatpush1.msra.mxu0 %v123
    %152 = vmatprep.subr.mxu0 0.0
    %153 = vmatpush1.msra.mxu0 %v124
    %154 = vmatprep.subr.mxu0 0.0
    %155 = vmatpush1.msra.mxu0 %v125
    %156 = vmatprep.subr.mxu0 0.0
    %157 = vmatpush1.msra.mxu0 %v126
    %158 = vmatprep.subr.mxu0 0.0
    %159 = vmatpush1.msra.mxu0 %v127
    %160 = vmatprep.subr.mxu0 0.0
    %161 = vmatpush1.msra.mxu0 0.0
    %162 = vmatprep.subr.mxu0 0.0
    %163 = vmatpush1.msra.mxu0 0.0
    %164 = vmatprep.subr.mxu0 0.0
    %165 = vmatpush1.msra.mxu0 0.0
    %166 = vmatprep.subr.mxu0 0.0
    %167 = vmatpush1.msra.mxu0 0.0
    %168 = vmatprep.subr.mxu0 0.0
    %169 = vmatpush1.msra.mxu0 0.0
    %170 = vmatprep.subr.mxu0 0.0
    %171 = vmatpush1.msra.mxu0 0.0
    %172 = vmatprep.subr.mxu0 0.0
    %173 = vmatpush1.msra.mxu0 0.0
    %174 = vmatprep.subr.mxu0 0.0
    %175 = vmatpush1.msra.mxu0 0.0
    %176 = vmatprep.subr.mxu0 0.0
    %177 = vmatpush1.msra.mxu0 0.0
    %178 = vmatprep.subr.mxu0 0.0
    %179 = vmatpush1.msra.mxu0 0.0
    %180 = vmatprep.subr.mxu0 0.0
    %181 = vmatpush1.msra.mxu0 0.0
    %182 = vmatprep.subr.mxu0 0.0
    %183 = vmatpush1.msra.mxu0 0.0
    %184 = vmatprep.subr.mxu0 0.0
    %185 = vmatpush1.msra.mxu0 0.0
    %186 = vmatprep.subr.mxu0 0.0
    %187 = vmatpush1.msra.mxu0 0.0
    %188 = vmatprep.subr.mxu0 0.0
    %189 = vmatpush1.msra.mxu0 0.0
    %190 = vmatprep.subr.mxu0 0.0
    %191 = vmatpush1.msra.mxu0 0.0
    %192 = vmatprep.mubr.f32.mxu0 0.0
    %193 = vmatmul.mubr.f32.gmra.mrb[0].mxu0 %v24
    %v194 = vpop.f32.mrb[0].mxu0
    %v195 = vadd.f32 0.0, %v194
    %v196 = vpop.f32.mrb[0].mxu0
    %197 = vdwg.mxu0
    %v198 = vld [vmem:[%s4] sm:$0xff]
    %v199 = vld [vmem:[%s4 + $0x8] sm:$0xff]
    %v200 = vld [vmem:[%s4 + $0x10] sm:$0xff]
    %v201 = vld [vmem:[%s4 + $0x18] sm:$0xff]
    %v202 = vld [vmem:[%s4 + $0x20] sm:$0xff]
    %v203 = vld [vmem:[%s4 + $0x28] sm:$0xff]
    %v204 = vld [vmem:[%s4 + $0x30] sm:$0xff]
    %v205 = vld [vmem:[%s4 + $0x38] sm:$0xff]
    %v206 = vld [vmem:[%s4 + $0x40] sm:$0xff]
    %v207 = vld [vmem:[%s4 + $0x48] sm:$0xff]
    %v208 = vld [vmem:[%s4 + $0x50] sm:$0xff]
    %v209 = vld [vmem:[%s4 + $0x58] sm:$0xff]
    %v210 = vld [vmem:[%s4 + $0x60] sm:$0xff]
    %v211 = vld [vmem:[%s4 + $0x68] sm:$0xff]
    %v212 = vld [vmem:[%s4 + $0x70] sm:$0xff]
    %v213 = vld [vmem:[%s4 + $0x78] sm:$0xff]
    %214 = vmatprep.subr.mxu0 0.0
    %215 = vmatpush1.msra.mxu0 %v198
    %216 = vmatprep.subr.mxu0 0.0
    %217 = vmatpush1.msra.mxu0 %v199
    %218 = vmatprep.subr.mxu0 0.0
    %219 = vmatpush1.msra.mxu0 %v200
    %220 = vmatprep.subr.mxu0 0.0
    %221 = vmatpush1.msra.mxu0 %v201
    %222 = vmatprep.subr.mxu0 0.0
    %223 = vmatpush1.msra.mxu0 %v202
    %224 = vmatprep.subr.mxu0 0.0
    %225 = vmatpush1.msra.mxu0 %v203
    %226 = vmatprep.subr.mxu0 0.0
    %227 = vmatpush1.msra.mxu0 %v204
    %228 = vmatprep.subr.mxu0 0.0
    %229 = vmatpush1.msra.mxu0 %v205
    %230 = vmatprep.subr.mxu0 0.0
    %231 = vmatpush1.msra.mxu0 %v206
    %232 = vmatprep.subr.mxu0 0.0
    %233 = vmatpush1.msra.mxu0 %v207
    %234 = vmatprep.subr.mxu0 0.0
    %235 = vmatpush1.msra.mxu0 %v208
    %236 = vmatprep.subr.mxu0 0.0
    %237 = vmatpush1.msra.mxu0 %v209
    %238 = vmatprep.subr.mxu0 0.0
    %239 = vmatpush1.msra.mxu0 %v210
    %240 = vmatprep.subr.mxu0 0.0
    %241 = vmatpush1.msra.mxu0 %v211
    %242 = vmatprep.subr.mxu0 0.0
    %243 = vmatpush1.msra.mxu0 %v212
    %244 = vmatprep.subr.mxu0 0.0
    %245 = vmatpush1.msra.mxu0 %v213
    %246 = vmatprep.subr.mxu0 0.0
    %247 = vmatpush1.msra.mxu0 0.0
    %248 = vmatprep.subr.mxu0 0.0
    %249 = vmatpush1.msra.mxu0 0.0
    %250 = vmatprep.subr.mxu0 0.0
    %251 = vmatpush1.msra.mxu0 0.0
    %252 = vmatprep.subr.mxu0 0.0
    %253 = vmatpush1.msra.mxu0 0.0
    %254 = vmatprep.subr.mxu0 0.0
    %255 = vmatpush1.msra.mxu0 0.0
    %256 = vmatprep.subr.mxu0 0.0
    %257 = vmatpush1.msra.mxu0 0.0
    %258 = vmatprep.subr.mxu0 0.0
    %259 = vmatpush1.msra.mxu0 0.0
    %260 = vmatprep.subr.mxu0 0.0
    %261 = vmatpush1.msra.mxu0 0.0
    %262 = vmatprep.subr.mxu0 0.0
    %263 = vmatpush1.msra.mxu0 0.0
    %264 = vmatprep.subr.mxu0 0.0
    %265 = vmatpush1.msra.mxu0 0.0
    %266 = vmatprep.subr.mxu0 0.0
    %267 = vmatpush1.msra.mxu0 0.0
    %268 = vmatprep.subr.mxu0 0.0
    %269 = vmatpush1.msra.mxu0 0.0
    %270 = vmatprep.subr.mxu0 0.0
    %271 = vmatpush1.msra.mxu0 0.0
    %272 = vmatprep.subr.mxu0 0.0
    %273 = vmatpush1.msra.mxu0 0.0
    %274 = vmatprep.subr.mxu0 0.0
    %275 = vmatpush1.msra.mxu0 0.0
    %276 = vmatprep.subr.mxu0 0.0
    %277 = vmatpush1.msra.mxu0 0.0
    %278 = vmatprep.mubr.f32.mxu0 0.0
    %279 = vmatmul.mubr.f32.gmra.mrb[0].mxu0 %v25
    %v280 = vpop.f32.mrb[0].mxu0
    %v281 = vadd.f32 0.0, %v280
    %v282 = vpop.f32.mrb[0].mxu0
    %283 = vdwg.mxu0
    %vm284 = vcmask 256000
    %285 = vst.msk [vmem:[#allocation2] sm:$0x7] %vm284, %v109
    %vm286 = vcmask 257024
    %287 = vst.msk [vmem:[#allocation3] sm:$0xf] %vm286, %v195
    %288 = vst.msk [vmem:[#allocation4] sm:$0x7] %vm284, %v281
    %290 = vrot.lane.b32.xlu0 %v109, 96
    %v291 = vpop.permute.xlu0 %290
    %293 = vst.msk [vmem:[#allocation2 + $0x3] sm:$0x7] %vm284, %v291
    %295 = vrot.lane.b32.xlu0 %v195, 96
    %v296 = vpop.permute.xlu0 %295
    %298 = vst.msk [vmem:[#allocation3 + $0x4] sm:$0xf] %vm286, %v296
    %300 = vrot.lane.b32.xlu0 %v281, 96
    %v301 = vpop.permute.xlu0 %300
    %303 = vst.msk [vmem:[#allocation4 + $0x3] sm:$0x7] %vm284, %v301
    %304 = vrot.lane.b32.xlu0 %v109, 64
    %v305 = vpop.permute.xlu0 %304
    %307 = vst.msk [vmem:[#allocation2 + $0x6] sm:$0x7] %vm284, %v305
    %308 = vrot.lane.b32.xlu0 %v195, 64
    %v309 = vpop.permute.xlu0 %308
    %311 = vst.msk [vmem:[#allocation3 + $0x8] sm:$0xf] %vm286, %v309
    %312 = vrot.lane.b32.xlu0 %v281, 64
    %v313 = vpop.permute.xlu0 %312
    %315 = vst.msk [vmem:[#allocation4 + $0x6] sm:$0x7] %vm284, %v313
    %316 = vrot.lane.b32.xlu0 %v109, 32
    %v317 = vpop.permute.xlu0 %316
    %319 = vst.msk [vmem:[#allocation2 + $0x9] sm:$0x7] %vm284, %v317
    %320 = vrot.lane.b32.xlu0 %v195, 32
    %v321 = vpop.permute.xlu0 %320
    %323 = vst.msk [vmem:[#allocation3 + $0xc] sm:$0xf] %vm286, %v321
    %324 = vrot.lane.b32.xlu0 %v281, 32
    %v325 = vpop.permute.xlu0 %324
    %327 = vst.msk [vmem:[#allocation4 + $0x9] sm:$0x7] %vm284, %v325
    %v328 = vld [vmem:[#allocation2] sm:$0x3f]
    %v329 = vld [vmem:[#allocation3] sm:$0xff]
    %v330 = vld [vmem:[#allocation4] sm:$0x3f]
    %vm331 = vcmask 261120
    %v333 = vsel %vm331, %v329, 0
    %v336 = vsel %vm331, %v328, 0
    %338 = vmatprep.subr.mxu0 0.0
    %339 = vmatpush1.xpose.msra.mxu0 %v336
    %340 = vmatprep.subr.mxu0 0.0
    %341 = vmatpush1.xpose.msra.mxu0 0.0
    %342 = vmatprep.subr.mxu0 0.0
    %343 = vmatpush1.xpose.msra.mxu0 0.0
    %344 = vmatprep.subr.mxu0 0.0
    %345 = vmatpush1.xpose.msra.mxu0 0.0
    %346 = vmatprep.subr.mxu0 0.0
    %347 = vmatpush1.xpose.msra.mxu0 0.0
    %348 = vmatprep.subr.mxu0 0.0
    %349 = vmatpush1.xpose.msra.mxu0 0.0
    %350 = vmatprep.subr.mxu0 0.0
    %351 = vmatpush1.xpose.msra.mxu0 0.0
    %352 = vmatprep.subr.mxu0 0.0
    %353 = vmatpush1.xpose.msra.mxu0 0.0
    %354 = vmatprep.subr.mxu0 0.0
    %355 = vmatpush1.xpose.msra.mxu0 0.0
    %356 = vmatprep.subr.mxu0 0.0
    %357 = vmatpush1.xpose.msra.mxu0 0.0
    %358 = vmatprep.subr.mxu0 0.0
    %359 = vmatpush1.xpose.msra.mxu0 0.0
    %360 = vmatprep.subr.mxu0 0.0
    %361 = vmatpush1.xpose.msra.mxu0 0.0
    %362 = vmatprep.subr.mxu0 0.0
    %363 = vmatpush1.xpose.msra.mxu0 0.0
    %364 = vmatprep.subr.mxu0 0.0
    %365 = vmatpush1.xpose.msra.mxu0 0.0
    %366 = vmatprep.subr.mxu0 0.0
    %367 = vmatpush1.xpose.msra.mxu0 0.0
    %368 = vmatprep.subr.mxu0 0.0
    %369 = vmatpush1.xpose.msra.mxu0 0.0
    %370 = vmatprep.subr.mxu0 0.0
    %371 = vmatpush1.xpose.msra.mxu0 0.0
    %372 = vmatprep.subr.mxu0 0.0
    %373 = vmatpush1.xpose.msra.mxu0 0.0
    %374 = vmatprep.subr.mxu0 0.0
    %375 = vmatpush1.xpose.msra.mxu0 0.0
    %376 = vmatprep.subr.mxu0 0.0
    %377 = vmatpush1.xpose.msra.mxu0 0.0
    %378 = vmatprep.subr.mxu0 0.0
    %379 = vmatpush1.xpose.msra.mxu0 0.0
    %380 = vmatprep.subr.mxu0 0.0
    %381 = vmatpush1.xpose.msra.mxu0 0.0
    %382 = vmatprep.subr.mxu0 0.0
    %383 = vmatpush1.xpose.msra.mxu0 0.0
    %384 = vmatprep.subr.mxu0 0.0
    %385 = vmatpush1.xpose.msra.mxu0 0.0
    %386 = vmatprep.subr.mxu0 0.0
    %387 = vmatpush1.xpose.msra.mxu0 0.0
    %388 = vmatprep.subr.mxu0 0.0
    %389 = vmatpush1.xpose.msra.mxu0 0.0
    %390 = vmatprep.subr.mxu0 0.0
    %391 = vmatpush1.xpose.msra.mxu0 0.0
    %392 = vmatprep.subr.mxu0 0.0
    %393 = vmatpush1.xpose.msra.mxu0 0.0
    %394 = vmatprep.subr.mxu0 0.0
    %395 = vmatpush1.xpose.msra.mxu0 0.0
    %396 = vmatprep.subr.mxu0 0.0
    %397 = vmatpush1.xpose.msra.mxu0 0.0
    %398 = vmatprep.subr.mxu0 0.0
    %399 = vmatpush1.xpose.msra.mxu0 0.0
    %400 = vmatprep.subr.mxu0 0.0
    %401 = vmatpush1.xpose.msra.mxu0 0.0
    %402 = vmatprep.mubr.f32.mxu0 0.0
    %403 = vmatmul.mubr.f32.gmra.mrb[0].mxu0 %v333
    %v404 = vpop.f32.mrb[0].mxu0
    %v405 = vadd.f32 0.0, %v404
    %v406 = vpop.f32.mrb[0].mxu0
    %407 = vdwg.mxu0
    %v408 = vmul.f32 %v405, 0.35355338
    %vm409 = vcmask 48128
    %v410 = vsel %vm409, %v408, -inf
    %411 = vmax.xlane.f32.xlu0 %v410
    %v412 = vpop.xlane.xlu0 %411
    %v413 = vsub.f32 %v408, %v412
    %v414 = vmul.f32 %v413, 1.442695
    %v415 = vpow.pop %v414
    %v416 = vsel %vm409, %v415, 0.0
    %417 = vadd.xlane.f32.xlu0 %v416
    %v418 = vpop.xlane.xlu0 %417
    %v419 = vrcp.pop %v418
    %v420 = vmul.f32 %v415, %v419
    %v422 = vsel %vm409, %v420, 0
    %vm424 = vcmask 1045504
    %v426 = vsel %vm424, %v330, 0
    %428 = vmatprep.subr.mxu0 0.0
    %429 = vmatpush1.msra.mxu0 %v426
    %430 = vmatprep.subr.mxu0 0.0
    %431 = vmatpush1.msra.mxu0 0.0
    %432 = vmatprep.subr.mxu0 0.0
    %433 = vmatpush1.msra.mxu0 0.0
    %434 = vmatprep.subr.mxu0 0.0
    %435 = vmatpush1.msra.mxu0 0.0
    %436 = vmatprep.subr.mxu0 0.0
    %437 = vmatpush1.msra.mxu0 0.0
    %438 = vmatprep.subr.mxu0 0.0
    %439 = vmatpush1.msra.mxu0 0.0
    %440 = vmatprep.subr.mxu0 0.0
    %441 = vmatpush1.msra.mxu0 0.0
    %442 = vmatprep.subr.mxu0 0.0
    %443 = vmatpush1.msra.mxu0 0.0
    %444 = vmatprep.subr.mxu0 0.0
    %445 = vmatpush1.msra.mxu0 0.0
    %446 = vmatprep.subr.mxu0 0.0
    %447 = vmatpush1.msra.mxu0 0.0
    %448 = vmatprep.subr.mxu0 0.0
    %449 = vmatpush1.msra.mxu0 0.0
    %450 = vmatprep.subr.mxu0 0.0
    %451 = vmatpush1.msra.mxu0 0.0
    %452 = vmatprep.subr.mxu0 0.0
    %453 = vmatpush1.msra.mxu0 0.0
    %454 = vmatprep.subr.mxu0 0.0
    %455 = vmatpush1.msra.mxu0 0.0
    %456 = vmatprep.subr.mxu0 0.0
    %457 = vmatpush1.msra.mxu0 0.0
    %458 = vmatprep.subr.mxu0 0.0
    %459 = vmatpush1.msra.mxu0 0.0
    %460 = vmatprep.subr.mxu0 0.0
    %461 = vmatpush1.msra.mxu0 0.0
    %462 = vmatprep.subr.mxu0 0.0
    %463 = vmatpush1.msra.mxu0 0.0
    %464 = vmatprep.subr.mxu0 0.0
    %465 = vmatpush1.msra.mxu0 0.0
    %466 = vmatprep.subr.mxu0 0.0
    %467 = vmatpush1.msra.mxu0 0.0
    %468 = vmatprep.subr.mxu0 0.0
    %469 = vmatpush1.msra.mxu0 0.0
    %470 = vmatprep.subr.mxu0 0.0
    %471 = vmatpush1.msra.mxu0 0.0
    %472 = vmatprep.subr.mxu0 0.0
    %473 = vmatpush1.msra.mxu0 0.0
    %474 = vmatprep.subr.mxu0 0.0
    %475 = vmatpush1.msra.mxu0 0.0
    %476 = vmatprep.subr.mxu0 0.0
    %477 = vmatpush1.msra.mxu0 0.0
    %478 = vmatprep.subr.mxu0 0.0
    %479 = vmatpush1.msra.mxu0 0.0
    %480 = vmatprep.subr.mxu0 0.0
    %481 = vmatpush1.msra.mxu0 0.0
    %482 = vmatprep.subr.mxu0 0.0
    %483 = vmatpush1.msra.mxu0 0.0
    %484 = vmatprep.subr.mxu0 0.0
    %485 = vmatpush1.msra.mxu0 0.0
    %486 = vmatprep.subr.mxu0 0.0
    %487 = vmatpush1.msra.mxu0 0.0
    %488 = vmatprep.subr.mxu0 0.0
    %489 = vmatpush1.msra.mxu0 0.0
    %490 = vmatprep.subr.mxu0 0.0
    %491 = vmatpush1.msra.mxu0 0.0
    %492 = vmatprep.mubr.f32.mxu0 0.0
    %493 = vmatmul.mubr.f32.gmra.mrb[0].mxu0 %v422
    %v494 = vpop.f32.mrb[0].mxu0
    %v495 = vadd.f32 0.0, %v494
    %v496 = vpop.f32.mrb[0].mxu0
    %497 = vdwg.mxu0
    %498 = vst.msk [vmem:[#allocation5] sm:$0xff] %vm331, %v495
    %v499 = vld [vmem:[#allocation2 + $0x6] sm:$0x3f]
    %v500 = vld [vmem:[#allocation3 + $0x8] sm:$0xff]
    %v501 = vld [vmem:[#allocation4 + $0x6] sm:$0x3f]
    %v503 = vsel %vm331, %v500, 0
    %v506 = vsel %vm331, %v499, 0
    %508 = vmatprep.subr.mxu0 0.0
    %509 = vmatpush1.xpose.msra.mxu0 %v506
    %510 = vmatprep.subr.mxu0 0.0
    %511 = vmatpush1.xpose.msra.mxu0 0.0
    %512 = vmatprep.subr.mxu0 0.0
    %513 = vmatpush1.xpose.msra.mxu0 0.0
    %514 = vmatprep.subr.mxu0 0.0
    %515 = vmatpush1.xpose.msra.mxu0 0.0
    %516 = vmatprep.subr.mxu0 0.0
    %517 = vmatpush1.xpose.msra.mxu0 0.0
    %518 = vmatprep.subr.mxu0 0.0
    %519 = vmatpush1.xpose.msra.mxu0 0.0
    %520 = vmatprep.subr.mxu0 0.0
    %521 = vmatpush1.xpose.msra.mxu0 0.0
    %522 = vmatprep.subr.mxu0 0.0
    %523 = vmatpush1.xpose.msra.mxu0 0.0
    %524 = vmatprep.subr.mxu0 0.0
    %525 = vmatpush1.xpose.msra.mxu0 0.0
    %526 = vmatprep.subr.mxu0 0.0
    %527 = vmatpush1.xpose.msra.mxu0 0.0
    %528 = vmatprep.subr.mxu0 0.0
    %529 = vmatpush1.xpose.msra.mxu0 0.0
    %530 = vmatprep.subr.mxu0 0.0
    %531 = vmatpush1.xpose.msra.mxu0 0.0
    %532 = vmatprep.subr.mxu0 0.0
    %533 = vmatpush1.xpose.msra.mxu0 0.0
    %534 = vmatprep.subr.mxu0 0.0
    %535 = vmatpush1.xpose.msra.mxu0 0.0
    %536 = vmatprep.subr.mxu0 0.0
    %537 = vmatpush1.xpose.msra.mxu0 0.0
    %538 = vmatprep.subr.mxu0 0.0
    %539 = vmatpush1.xpose.msra.mxu0 0.0
    %540 = vmatprep.subr.mxu0 0.0
    %541 = vmatpush1.xpose.msra.mxu0 0.0
    %542 = vmatprep.subr.mxu0 0.0
    %543 = vmatpush1.xpose.msra.mxu0 0.0
    %544 = vmatprep.subr.mxu0 0.0
    %545 = vmatpush1.xpose.msra.mxu0 0.0
    %546 = vmatprep.subr.mxu0 0.0
    %547 = vmatpush1.xpose.msra.mxu0 0.0
    %548 = vmatprep.subr.mxu0 0.0
    %549 = vmatpush1.xpose.msra.mxu0 0.0
    %550 = vmatprep.subr.mxu0 0.0
    %551 = vmatpush1.xpose.msra.mxu0 0.0
    %552 = vmatprep.subr.mxu0 0.0
    %553 = vmatpush1.xpose.msra.mxu0 0.0
    %554 = vmatprep.subr.mxu0 0.0
    %555 = vmatpush1.xpose.msra.mxu0 0.0
    %556 = vmatprep.subr.mxu0 0.0
    %557 = vmatpush1.xpose.msra.mxu0 0.0
    %558 = vmatprep.subr.mxu0 0.0
    %559 = vmatpush1.xpose.msra.mxu0 0.0
    %560 = vmatprep.subr.mxu0 0.0
    %561 = vmatpush1.xpose.msra.mxu0 0.0
    %562 = vmatprep.subr.mxu0 0.0
    %563 = vmatpush1.xpose.msra.mxu0 0.0
    %564 = vmatprep.subr.mxu0 0.0
    %565 = vmatpush1.xpose.msra.mxu0 0.0
    %566 = vmatprep.subr.mxu0 0.0
    %567 = vmatpush1.xpose.msra.mxu0 0.0
    %568 = vmatprep.subr.mxu0 0.0
    %569 = vmatpush1.xpose.msra.mxu0 0.0
    %570 = vmatprep.subr.mxu0 0.0
    %571 = vmatpush1.xpose.msra.mxu0 0.0
    %572 = vmatprep.mubr.f32.mxu0 0.0
    %573 = vmatmul.mubr.f32.gmra.mrb[0].mxu0 %v503
    %v574 = vpop.f32.mrb[0].mxu0
    %v575 = vadd.f32 0.0, %v574
    %v576 = vpop.f32.mrb[0].mxu0
    %577 = vdwg.mxu0
    %v578 = vmul.f32 %v575, 0.35355338
    %v579 = vsel %vm409, %v578, -inf
    %580 = vmax.xlane.f32.xlu0 %v579
    %v581 = vpop.xlane.xlu0 %580
    %v582 = vsub.f32 %v578, %v581
    %v583 = vmul.f32 %v582, 1.442695
    %v584 = vpow.pop %v583
    %v585 = vsel %vm409, %v584, 0.0
    %586 = vadd.xlane.f32.xlu0 %v585
    %v587 = vpop.xlane.xlu0 %586
    %v588 = vrcp.pop %v587
    %v589 = vmul.f32 %v584, %v588
    %v591 = vsel %vm409, %v589, 0
    %v594 = vsel %vm424, %v501, 0
    %596 = vmatprep.subr.mxu0 0.0
    %597 = vmatpush1.msra.mxu0 %v594
    %598 = vmatprep.subr.mxu0 0.0
    %599 = vmatpush1.msra.mxu0 0.0
    %600 = vmatprep.subr.mxu0 0.0
    %601 = vmatpush1.msra.mxu0 0.0
    %602 = vmatprep.subr.mxu0 0.0
    %603 = vmatpush1.msra.mxu0 0.0
    %604 = vmatprep.subr.mxu0 0.0
    %605 = vmatpush1.msra.mxu0 0.0
    %606 = vmatprep.subr.mxu0 0.0
    %607 = vmatpush1.msra.mxu0 0.0
    %608 = vmatprep.subr.mxu0 0.0
    %609 = vmatpush1.msra.mxu0 0.0
    %610 = vmatprep.subr.mxu0 0.0
    %611 = vmatpush1.msra.mxu0 0.0
    %612 = vmatprep.subr.mxu0 0.0
    %613 = vmatpush1.msra.mxu0 0.0
    %614 = vmatprep.subr.mxu0 0.0
    %615 = vmatpush1.msra.mxu0 0.0
    %616 = vmatprep.subr.mxu0 0.0
    %617 = vmatpush1.msra.mxu0 0.0
    %618 = vmatprep.subr.mxu0 0.0
    %619 = vmatpush1.msra.mxu0 0.0
    %620 = vmatprep.subr.mxu0 0.0
    %621 = vmatpush1.msra.mxu0 0.0
    %622 = vmatprep.subr.mxu0 0.0
    %623 = vmatpush1.msra.mxu0 0.0
    %624 = vmatprep.subr.mxu0 0.0
    %625 = vmatpush1.msra.mxu0 0.0
    %626 = vmatprep.subr.mxu0 0.0
    %627 = vmatpush1.msra.mxu0 0.0
    %628 = vmatprep.subr.mxu0 0.0
    %629 = vmatpush1.msra.mxu0 0.0
    %630 = vmatprep.subr.mxu0 0.0
    %631 = vmatpush1.msra.mxu0 0.0
    %632 = vmatprep.subr.mxu0 0.0
    %633 = vmatpush1.msra.mxu0 0.0
    %634 = vmatprep.subr.mxu0 0.0
    %635 = vmatpush1.msra.mxu0 0.0
    %636 = vmatprep.subr.mxu0 0.0
    %637 = vmatpush1.msra.mxu0 0.0
    %638 = vmatprep.subr.mxu0 0.0
    %639 = vmatpush1.msra.mxu0 0.0
    %640 = vmatprep.subr.mxu0 0.0
    %641 = vmatpush1.msra.mxu0 0.0
    %642 = vmatprep.subr.mxu0 0.0
    %643 = vmatpush1.msra.mxu0 0.0
    %644 = vmatprep.subr.mxu0 0.0
    %645 = vmatpush1.msra.mxu0 0.0
    %646 = vmatprep.subr.mxu0 0.0
    %647 = vmatpush1.msra.mxu0 0.0
    %648 = vmatprep.subr.mxu0 0.0
    %649 = vmatpush1.msra.mxu0 0.0
    %650 = vmatprep.subr.mxu0 0.0
    %651 = vmatpush1.msra.mxu0 0.0
    %652 = vmatprep.subr.mxu0 0.0
    %653 = vmatpush1.msra.mxu0 0.0
    %654 = vmatprep.subr.mxu0 0.0
    %655 = vmatpush1.msra.mxu0 0.0
    %656 = vmatprep.subr.mxu0 0.0
    %657 = vmatpush1.msra.mxu0 0.0
    %658 = vmatprep.subr.mxu0 0.0
    %659 = vmatpush1.msra.mxu0 0.0
    %660 = vmatprep.mubr.f32.mxu0 0.0
    %661 = vmatmul.mubr.f32.gmra.mrb[0].mxu0 %v591
    %v662 = vpop.f32.mrb[0].mxu0
    %v663 = vadd.f32 0.0, %v662
    %v664 = vpop.f32.mrb[0].mxu0
    %665 = vdwg.mxu0
    %666 = vst.msk [vmem:[#allocation5 + $0x8] sm:$0xff] %vm331, %v663
    %v667 = vld [vmem:[#allocation5] sm:$0xff]
    %v668 = vld [vmem:[#allocation5 + $0x8] sm:$0xff]
    %v669 = vld [vmem:[%s5] sm:$0xff]
    %v670 = vld [vmem:[%s5 + $0x8] sm:$0xff]
    %v671 = vld [vmem:[%s5 + $0x10] sm:$0xff]
    %v672 = vld [vmem:[%s5 + $0x18] sm:$0xff]
    %v674 = vsel %vm331, %v667, 0
    %v677 = vsel %vm331, %v668, 0
    %679 = vmatprep.subr.mxu0 0.0
    %680 = vmatpush1.msra.mxu0 %v669
    %681 = vmatprep.subr.mxu0 0.0
    %682 = vmatpush1.msra.mxu0 %v670
    %683 = vmatprep.subr.mxu0 0.0
    %684 = vmatpush1.msra.mxu0 %v671
    %685 = vmatprep.subr.mxu0 0.0
    %686 = vmatpush1.msra.mxu0 %v672
    %687 = vmatprep.subr.mxu0 0.0
    %688 = vmatpush1.msra.mxu0 0.0
    %689 = vmatprep.subr.mxu0 0.0
    %690 = vmatpush1.msra.mxu0 0.0
    %691 = vmatprep.subr.mxu0 0.0
    %692 = vmatpush1.msra.mxu0 0.0
    %693 = vmatprep.subr.mxu0 0.0
    %694 = vmatpush1.msra.mxu0 0.0
    %695 = vmatprep.subr.mxu0 0.0
    %696 = vmatpush1.msra.mxu0 0.0
    %697 = vmatprep.subr.mxu0 0.0
    %698 = vmatpush1.msra.mxu0 0.0
    %699 = vmatprep.subr.mxu0 0.0
    %700 = vmatpush1.msra.mxu0 0.0
    %701 = vmatprep.subr.mxu0 0.0
    %702 = vmatpush1.msra.mxu0 0.0
    %703 = vmatprep.subr.mxu0 0.0
    %704 = vmatpush1.msra.mxu0 0.0
    %705 = vmatprep.subr.mxu0 0.0
    %706 = vmatpush1.msra.mxu0 0.0
    %707 = vmatprep.subr.mxu0 0.0
    %708 = vmatpush1.msra.mxu0 0.0
    %709 = vmatprep.subr.mxu0 0.0
    %710 = vmatpush1.msra.mxu0 0.0
    %711 = vmatprep.subr.mxu0 0.0
    %712 = vmatpush1.msra.mxu0 0.0
    %713 = vmatprep.subr.mxu0 0.0
    %714 = vmatpush1.msra.mxu0 0.0
    %715 = vmatprep.subr.mxu0 0.0
    %716 = vmatpush1.msra.mxu0 0.0
    %717 = vmatprep.subr.mxu0 0.0
    %718 = vmatpush1.msra.mxu0 0.0
    %719 = vmatprep.subr.mxu0 0.0
    %720 = vmatpush1.msra.mxu0 0.0
    %721 = vmatprep.subr.mxu0 0.0
    %722 = vmatpush1.msra.mxu0 0.0
    %723 = vmatprep.subr.mxu0 0.0
    %724 = vmatpush1.msra.mxu0 0.0
    %725 = vmatprep.subr.mxu0 0.0
    %726 = vmatpush1.msra.mxu0 0.0
    %727 = vmatprep.subr.mxu0 0.0
    %728 = vmatpush1.msra.mxu0 0.0
    %729 = vmatprep.subr.mxu0 0.0
    %730 = vmatpush1.msra.mxu0 0.0
    %731 = vmatprep.subr.mxu0 0.0
    %732 = vmatpush1.msra.mxu0 0.0
    %733 = vmatprep.subr.mxu0 0.0
    %734 = vmatpush1.msra.mxu0 0.0
    %735 = vmatprep.subr.mxu0 0.0
    %736 = vmatpush1.msra.mxu0 0.0
    %737 = vmatprep.subr.mxu0 0.0
    %738 = vmatpush1.msra.mxu0 0.0
    %739 = vmatprep.subr.mxu0 0.0
    %740 = vmatpush1.msra.mxu0 0.0
    %741 = vmatprep.subr.mxu0 0.0
    %742 = vmatpush1.msra.mxu0 0.0
    %743 = vmatprep.mubr.f32.mxu0 0.0
    %744 = vmatmul.mubr.f32.gmra.mrb[0].mxu0 %v674
    %v745 = vpop.f32.mrb[0].mxu0
    %v746 = vadd.f32 0.0, %v745
    %v747 = vpop.f32.mrb[0].mxu0
    %748 = vmatprep.mubr.f32.mxu0 0.0
    %749 = vmatmul.mubr.f32.gmra.mrb[0].mxu0 %v677
    %v750 = vpop.f32.mrb[0].mxu0
    %v751 = vadd.f32 0.0, %v750
    %v752 = vpop.f32.mrb[0].mxu0
    %753 = vdwg.mxu0
    %754 = vst.msk [vmem:[#allocation6] sm:$0xff] %vm331, %v746
    %755 = vst.msk [vmem:[#allocation6 + $0x8] sm:$0xff] %vm331, %v751
    // Predicated region
    $region26: #{multi_head_opp_attention.1} parent=1 // pred_check
      _
    $region27: #{multi_head_opp_attention.1} parent=1 // pred_check_branch
      %757 = sbr.rel (0) target = $region29
    $region28: #{multi_head_opp_attention.1} parent=1 // pred_region
      %s759 = ssub.s32 256, 256
      %760 = vsyncadd [#allocation7], %s759
      %s761 = sshll.u32 [#allocation6], 4
      %s762 = int_to_ptr.vmem [resolvable:$true] %s761
      %767 = dma.vmem_to_hbm [thread:$0]  %s762, 256, %s6, [#allocation7], 128, 128, 8
    $region29: #{multi_head_opp_attention.1} parent=1 // pred_fallthru
      _
    // Predicated region
    $region30: #{multi_head_opp_attention.1} parent=1 // pred_check
      _
    $region31: #{multi_head_opp_attention.1} parent=1 // pred_check_branch
      %769 = sbr.rel (0) target = $region33
    $region32: #{multi_head_opp_attention.1} parent=1 // pred_region
      %770 = dma.done [#allocation7], 256
    $region33: #{multi_head_opp_attention.1} parent=1 // pred_fallthru
      _
    %771 = vsyncpa [#allocation7], 1

</llo_original>
